<compile_context>
chip_gen: v6e
topology: v6e:2x2x1
jax: 0.10.0
libtpu: 0.0.40
codegen_flags: <defaults>
</compile_context>

<pallas_src>
import functools

import jax
import jax.numpy as jnp
from jax.experimental import pallas as pl
from jax.experimental.pallas import tpu as pltpu

VMEM_LIMIT = 32 * 1024 * 1024   # conservative: fits v7x (64 MiB/TC) as well


# ----------------------------------------------------------------------------
# helpers
# ----------------------------------------------------------------------------
def _round_up(x, m):
    return (x + m - 1) // m * m


def _pick_tile(dim, candidates):
    assert dim % 128 == 0, dim
    for c in candidates:
        if dim % c == 0:
            return c
    return 128


def _choose_tm(m):
    """Prefer tiles that divide M exactly (no pad copy); pad only as fallback."""
    if m <= 256:
        mp = _round_up(m, 8)
        return mp, mp
    for tm in (512, 256, 128):
        if m % tm == 0:
            return m, tm
    return _round_up(m, 128), 128


# ----------------------------------------------------------------------------
# Pallas kernels
# ----------------------------------------------------------------------------
def _matmul_bn_kernel(*refs, relu, has_res):
    """C = A @ B, then per-column scale/shift (+residual) (+ReLU) on k-finalize."""
    if has_res:
        a_ref, b_ref, s_ref, t_ref, r_ref, o_ref, acc_ref = refs
    else:
        a_ref, b_ref, s_ref, t_ref, o_ref, acc_ref = refs
        r_ref = None

    @pl.when(pl.program_id(2) == 0)
    def _():
        acc_ref[...] = jnp.zeros_like(acc_ref)

    acc_ref[...] += jnp.dot(a_ref[...], b_ref[...],
                            preferred_element_type=jnp.float32)

    @pl.when(pl.program_id(2) == pl.num_programs(2) - 1)
    def _():
        y = acc_ref[...] * s_ref[...] + t_ref[...]
        if has_res:
            y = y + r_ref[...].astype(jnp.float32)
        if relu:
            y = jnp.maximum(y, 0.0)
        o_ref[...] = y.astype(o_ref.dtype)


def pallas_matmul_bn(a, w, scale, shift, relu, residual=None,
                     out_dtype=jnp.bfloat16):
    """A:(M,K) bf16-castable, w:(Kp,Np) pre-padded bf16, scale/shift:(1,Np) f32.

    Optional residual:(M,Np) is added (post-BN, pre-ReLU) in the epilogue.
    """
    M, K = a.shape
    Kp, Np = w.shape
    assert K <= Kp

    Mp, tm = _choose_tm(M)
    if Mp <= 64 or Kp <= 512:
        tk = Kp                                   # single k step for small GEMMs
    else:
        tk = _pick_tile(Kp, (512, 384, 256, 128))
    tn = _pick_tile(Np, (512, 256, 128))

    a_bf = a.astype(jnp.bfloat16)
    if Mp != M or Kp != K:
        a_bf = jnp.pad(a_bf, ((0, Mp - M), (0, Kp - K)))

    args = [a_bf, w, scale, shift]
    in_specs = [pl.BlockSpec((tm, tk), lambda i, j, k: (i, k)),
                pl.BlockSpec((tk, tn), lambda i, j, k: (k, j)),
                pl.BlockSpec((1, tn), lambda i, j, k: (0, j)),
                pl.BlockSpec((1, tn), lambda i, j, k: (0, j))]
    if residual is not None:
        r = residual.astype(jnp.bfloat16)
        assert r.shape == (M, Np), (r.shape, (M, Np))
        if Mp != M:
            r = jnp.pad(r, ((0, Mp - M), (0, 0)))
        args.append(r)
        in_specs.append(pl.BlockSpec((tm, tn), lambda i, j, k: (i, j)))

    kern = functools.partial(_matmul_bn_kernel, relu=relu,
                             has_res=residual is not None)
    out = pl.pallas_call(
        kern,
        out_shape=jax.ShapeDtypeStruct((Mp, Np), out_dtype),
        grid=(Mp // tm, Np // tn, Kp // tk),
        in_specs=in_specs,
        out_specs=pl.BlockSpec((tm, tn), lambda i, j, k: (i, j)),
        scratch_shapes=[pltpu.VMEM((tm, tn), jnp.float32)],
        compiler_params=pltpu.CompilerParams(
            dimension_semantics=("parallel", "parallel", "arbitrary"),
            vmem_limit_bytes=VMEM_LIMIT),
    )(*args)
    return out[:M] if Mp != M else out


def _conv3x3_s1_kernel(x_ref, w_ref, s_ref, t_ref, o_ref, acc_ref,
                       *, offsets, m, relu):
    """Direct 3x3/stride-1 conv for one image.

    x_ref : (1, (H+3)*(W+2), Cp)  flat spatially-padded image (bf16)
    w_ref : (9, Cp, tn)           per-tap weights (bf16)
    o_ref : (1, H*(W+2), tn)      output in flat padded-W coords (2 junk cols/row)
    """
    acc_ref[...] = jnp.dot(x_ref[0, pl.ds(offsets[0], m), :], w_ref[0],
                           preferred_element_type=jnp.float32)
    for t in range(1, 9):
        acc_ref[...] += jnp.dot(x_ref[0, pl.ds(offsets[t], m), :], w_ref[t],
                                preferred_element_type=jnp.float32)
    y = acc_ref[...] * s_ref[...] + t_ref[...]
    if relu:
        y = jnp.maximum(y, 0.0)
    o_ref[0] = y.astype(o_ref.dtype)


def _direct_conv_fits(H, W, cp):
    """Rough double-buffered VMEM estimate for the per-image direct conv."""
    Wp = W + 2
    M = H * Wp
    cin_p, cout_p = cp["cin_p"], cp["cout_p"]
    tn = min(cout_p, 512)
    est = (2 * (H + 3) * Wp * cin_p * 2        # x block (double buffered)
           + 2 * 9 * cin_p * tn * 2            # weights
           + 2 * M * tn * 2                    # output
           + M * tn * 4)                       # f32 acc
    return est < 24 * 1024 * 1024


def conv3x3_s1_bn_relu(x_nhwc, cp):
    """3x3 / stride-1 / pad-1 conv + folded BN + ReLU, no im2col HBM blowup."""
    N, H, W, Cp = x_nhwc.shape
    Wp = W + 2
    Cout_p = cp["cout_p"]
    tn = min(Cout_p, 512)
    M = H * Wp                                   # output rows per image (flat)
    L = (H + 3) * Wp                             # padded flat rows per image

    xpad = jnp.pad(x_nhwc, ((0, 0), (1, 2), (1, 1), (0, 0)))
    xflat = xpad.reshape(N, L, Cp)
    offsets = tuple(di * Wp + dj for di in range(3) for dj in range(3))

    kern = functools.partial(_conv3x3_s1_kernel, offsets=offsets, m=M, relu=True)
    out = pl.pallas_call(
        kern,
        out_shape=jax.ShapeDtypeStruct((N, M, Cout_p), jnp.bfloat16),
        grid=(N, Cout_p // tn),
        in_specs=[pl.BlockSpec((1, L, Cp), lambda n, j: (n, 0, 0)),
                  pl.BlockSpec((9, Cp, tn), lambda n, j: (0, 0, j)),
                  pl.BlockSpec((1, tn), lambda n, j: (0, j)),
                  pl.BlockSpec((1, tn), lambda n, j: (0, j))],
        out_specs=pl.BlockSpec((1, M, tn), lambda n, j: (n, 0, j)),
        scratch_shapes=[pltpu.VMEM((M, tn), jnp.float32)],
        compiler_params=pltpu.CompilerParams(
            dimension_semantics=("parallel", "parallel"),
            vmem_limit_bytes=VMEM_LIMIT),
    )(xflat, cp["w3"], cp["scale"], cp["shift"])

    out = out.reshape(N, H, Wp, Cout_p)[:, :, :W, :]       # drop 2 junk cols/row
    return out.reshape(N * H * W, Cout_p), (N, H, W)


def _maxpool3x3_s2_kernel(ee_ref, eo_ref, oe_ref, oo_ref, o_ref, *, m, ws):
    """3x3/stride-2 max over 9 unit-offset views of 4 even/odd phase tensors."""
    out = jnp.maximum(ee_ref[0, pl.ds(0, m), :], eo_ref[0, pl.ds(0, m), :])
    out = jnp.maximum(out, oe_ref[0, pl.ds(0, m), :])
    out = jnp.maximum(out, oo_ref[0, pl.ds(0, m), :])
    out = jnp.maximum(out, ee_ref[0, pl.ds(1, m), :])
    out = jnp.maximum(out, oe_ref[0, pl.ds(1, m), :])
    out = jnp.maximum(out, ee_ref[0, pl.ds(ws, m), :])
    out = jnp.maximum(out, eo_ref[0, pl.ds(ws, m), :])
    out = jnp.maximum(out, ee_ref[0, pl.ds(ws + 1, m), :])
    o_ref[0] = out


def pallas_maxpool3x3_s2(x_nhwc):
    """3x3 maxpool, stride 2, pad 1 on (N,H,W,Cp) with even H,W."""
    N, H, W, Cp = x_nhwc.shape
    Ho, Wo = H // 2, W // 2
    neg = float(jnp.finfo(jnp.bfloat16).min)
    xpad = jnp.pad(x_nhwc, ((0, 0), (1, 3), (1, 1), (0, 0)),
                   constant_values=neg)
    # even/odd phase split (1x activation traffic, done once in XLA glue)
    ee = xpad[:, 0::2, 0::2, :]
    eo = xpad[:, 0::2, 1::2, :]
    oe = xpad[:, 1::2, 0::2, :]
    oo = xpad[:, 1::2, 1::2, :]
    He, We = Ho + 2, Wo + 1
    L = He * We
    M = Ho * We                                  # one junk col per output row

    def flat(t):
        return t.reshape(N, L, Cp)

    kern = functools.partial(_maxpool3x3_s2_kernel, m=M, ws=We)
    out = pl.pallas_call(
        kern,
        out_shape=jax.ShapeDtypeStruct((N, M, Cp), x_nhwc.dtype),
        grid=(N,),
        in_specs=[pl.BlockSpec((1, L, Cp), lambda n: (n, 0, 0)) for _ in range(4)],
        out_specs=pl.BlockSpec((1, M, Cp), lambda n: (n, 0, 0)),
        compiler_params=pltpu.CompilerParams(
            dimension_semantics=("parallel",),
            vmem_limit_bytes=VMEM_LIMIT),
    )(flat(ee), flat(eo), flat(oe), flat(oo))

    out = out.reshape(N, Ho, We, Cp)[:, :, :Wo, :]
    return out.reshape(N * Ho * Wo, Cp), (N, Ho, Wo)


def _avgpool_fc_kernel(x_ref, w_ref, b_ref, o_ref, *, inv_hw):
    pooled = jnp.sum(x_ref[...].astype(jnp.float32), axis=1) * inv_hw   # (N, C)
    logits = jnp.dot(pooled.astype(jnp.bfloat16), w_ref[...],
                     preferred_element_type=jnp.float32)
    o_ref[...] = logits + b_ref[...]


def pallas_avgpool_fc(x_nlc, fc):
    """Fused global average pool + fc (bias in-kernel); one launch."""
    N, HW, C = x_nlc.shape
    K, Np = fc["w"].shape
    assert K == C
    kern = functools.partial(_avgpool_fc_kernel, inv_hw=1.0 / HW)
    return pl.pallas_call(
        kern,
        out_shape=jax.ShapeDtypeStruct((N, Np), jnp.float32),
        grid=(1,),
        in_specs=[pl.BlockSpec((N, HW, C), lambda i: (0, 0, 0)),
                  pl.BlockSpec((K, Np), lambda i: (0, 0)),
                  pl.BlockSpec((1, Np), lambda i: (0, 0))],
        out_specs=pl.BlockSpec((N, Np), lambda i: (0, 0)),
        compiler_params=pltpu.CompilerParams(
            dimension_semantics=("arbitrary",),
            vmem_limit_bytes=VMEM_LIMIT),
    )(x_nlc, fc["w"], fc["b"])


# ----------------------------------------------------------------------------
# conv glue (im2col only for the 7x7 stem + stride-2 3x3 convs)
# ----------------------------------------------------------------------------
def im2col(x_nhwc, kh, kw, stride, padding):
    N, H, W, C = x_nhwc.shape
    xp = jnp.pad(x_nhwc,
                 ((0, 0), (padding, padding), (padding, padding), (0, 0)))
    Ho = (H + 2 * padding - kh) // stride + 1
    Wo = (W + 2 * padding - kw) // stride + 1
    cols = []
    for di in range(kh):
        for dj in range(kw):
            sl = jax.lax.slice(
                xp, (0, di, dj, 0),
                (N, di + (Ho - 1) * stride + 1, dj + (Wo - 1) * stride + 1, C),
                (1, stride, stride, 1))
            cols.append(sl)
    patches = jnp.stack(cols, axis=3)            # (N, Ho, Wo, kh*kw, C)
    return patches.reshape(N * Ho * Wo, kh * kw * C), (N, Ho, Wo)


def conv2d_bn(x_nhwc, cp, stride, padding, relu, residual=None,
              out_dtype=jnp.bfloat16):
    """Conv + folded BN (+residual) (+ReLU) as one fused Pallas matmul."""
    kh, kw = cp["kh"], cp["kw"]
    N, H, W, C = x_nhwc.shape
    if kh == 1 and kw == 1 and padding == 0:
        if stride > 1:
            x_nhwc = x_nhwc[:, ::stride, ::stride, :]
        Ho, Wo = x_nhwc.shape[1], x_nhwc.shape[2]
        a = x_nhwc.reshape(N * Ho * Wo, C)
    else:
        a, (N, Ho, Wo) = im2col(x_nhwc, kh, kw, stride, padding)
    y = pallas_matmul_bn(a, cp["w"], cp["scale"], cp["shift"], relu,
                         residual=residual, out_dtype=out_dtype)
    return y, (N, Ho, Wo)


# ----------------------------------------------------------------------------
# deterministic parameter init + one-time padding/bf16 prep (no checkpoint)
# ----------------------------------------------------------------------------
_KEY = jax.random.PRNGKey(0)
_COUNTER = [0]


def _next_key():
    _COUNTER[0] += 1
    return jax.random.fold_in(_KEY, _COUNTER[0])


def conv_init(cout, cin, kh, kw):
    fan_in = cin * kh * kw
    return (jax.random.normal(_next_key(), (cout, cin, kh, kw), jnp.float32)
            * jnp.sqrt(2.0 / fan_in))


def bn_init(c, eps=1e-5):
    # Eval-mode BN: running_mean=0, running_var=1, random gamma/beta -> affine.
    gamma = 1.0 + 0.1 * jax.random.normal(_next_key(), (c,), jnp.float32)
    beta = 0.1 * jax.random.normal(_next_key(), (c,), jnp.float32)
    mean = jnp.zeros((c,), jnp.float32)
    var = jnp.ones((c,), jnp.float32)
    scale = gamma / jnp.sqrt(var + eps)
    shift = beta - mean * scale
    return scale, shift


def prep_conv_bn(w_oihw, scale, shift, cin_pad=True):
    """Pad Cin/Cout to 128 multiples; fold to matmul (and per-tap) bf16 weights."""
    Cout, Cin, kh, kw = w_oihw.shape
    Cin_p = _round_up(Cin, 128) if cin_pad else Cin
    Cout_p = _round_up(Cout, 128)
    w_hwio = jnp.transpose(w_oihw, (2, 3, 1, 0))                 # (kh,kw,Cin,Cout)
    w_full = jnp.zeros((kh, kw, Cin_p, Cout_p), jnp.float32)
    w_full = w_full.at[:, :, :Cin, :Cout].set(w_hwio)
    K = kh * kw * Cin_p
    Kp = _round_up(K, 128)
    wmat = jnp.zeros((Kp, Cout_p), jnp.bfloat16)
    wmat = wmat.at[:K].set(w_full.reshape(K, Cout_p).astype(jnp.bfloat16))
    s = jnp.zeros((1, Cout_p), jnp.float32).at[0, :Cout].set(scale)
    t = jnp.zeros((1, Cout_p), jnp.float32).at[0, :Cout].set(shift)
    d = {"w": wmat, "scale": s, "shift": t, "kh": kh, "kw": kw,
         "cout": Cout, "cout_p": Cout_p, "cin_p": Cin_p}
    if kh == 3 and kw == 3:
        d["w3"] = w_full.reshape(9, Cin_p, Cout_p).astype(jnp.bfloat16)
    return d


def prep_fc(w, b):
    K, Ncls = w.shape
    Np = _round_up(Ncls, 128)
    wmat = jnp.zeros((K, Np), jnp.bfloat16).at[:, :Ncls].set(
        w.astype(jnp.bfloat16))
    bias = jnp.zeros((1, Np), jnp.float32).at[0, :Ncls].set(b)
    return {"w": wmat, "b": bias, "n": Ncls}


def make_params(num_classes=4):
    p = {"conv1": prep_conv_bn(conv_init(64, 3, 7, 7), *bn_init(64),
                               cin_pad=False)}
    layers = []
    inplanes = 64
    cfg = [(64, 3, 1), (128, 4, 2), (256, 6, 2), (512, 3, 2)]    # ResNet-50
    for planes, blocks, stride in cfg:
        blist = []
        for bi in range(blocks):
            s = stride if bi == 0 else 1
            has_down = bi == 0
            bp = {
                "conv1": prep_conv_bn(conv_init(planes, inplanes, 1, 1),
                                      *bn_init(planes)),
                "conv2": prep_conv_bn(conv_init(planes, planes, 3, 3),
                                      *bn_init(planes)),
                "conv3": prep_conv_bn(conv_init(planes * 4, planes, 1, 1),
                                      *bn_init(planes * 4)),
                "stride": s,
                "has_down": has_down,
            }
            if has_down:
                bp["down"] = prep_conv_bn(conv_init(planes * 4, inplanes, 1, 1),
                                          *bn_init(planes * 4))
            blist.append(bp)
            inplanes = planes * 4
        layers.append(blist)
    p["layers"] = layers
    fc_w = (jax.random.normal(_next_key(), (2048, num_classes), jnp.float32)
            * jnp.sqrt(1.0 / 2048))
    fc_b = 0.01 * jax.random.normal(_next_key(), (num_classes,), jnp.float32)
    p["fc"] = prep_fc(fc_w, fc_b)
    return p


# ----------------------------------------------------------------------------
# forward pass
# ----------------------------------------------------------------------------
def bottleneck(x_flat, shape, bp):
    N, H, W = shape
    cin_p = x_flat.shape[1]
    x_nhwc = x_flat.reshape(N, H, W, cin_p)

    # conv1 1x1 + BN + ReLU
    y1, _ = conv2d_bn(x_nhwc, bp["conv1"], stride=1, padding=0, relu=True)
    y1_nhwc = y1.reshape(N, H, W, bp["conv1"]["cout_p"])

    # conv2 3x3 (+BN+ReLU); direct per-image kernel when stride == 1
    if bp["stride"] == 1 and _direct_conv_fits(H, W, bp["conv2"]):
        y2, (N, Ho, Wo) = conv3x3_s1_bn_relu(y1_nhwc, bp["conv2"])
    else:
        y2, (N, Ho, Wo) = conv2d_bn(y1_nhwc, bp["conv2"], stride=bp["stride"],
                                    padding=1, relu=True)

    # identity / downsample path
    if bp["has_down"]:
        idy, _ = conv2d_bn(x_nhwc, bp["down"], stride=bp["stride"], padding=0,
                           relu=False)
    else:
        idy = x_flat

    # conv3 1x1 + BN + residual + ReLU, all fused into one matmul epilogue
    y3 = pallas_matmul_bn(y2, bp["conv3"]["w"], bp["conv3"]["scale"],
                          bp["conv3"]["shift"], relu=True, residual=idy)
    return y3, (N, Ho, Wo)


def mrinet2d_forward(x_nchw, params):
    # NCHW -> NHWC, bf16 activations throughout (f32 accumulation inside kernels).
    x = jnp.transpose(x_nchw, (0, 2, 3, 1)).astype(jnp.bfloat16)

    # stem: conv7x7/2 + BN + ReLU (fused matmul) then 3x3/2 maxpool kernel
    y, (N, Ho, Wo) = conv2d_bn(x, params["conv1"], stride=2, padding=3, relu=True)
    y_nhwc = y.reshape(N, Ho, Wo, params["conv1"]["cout_p"])
    y, shape = pallas_maxpool3x3_s2(y_nhwc)

    # 4 stages of bottleneck blocks
    for blist in params["layers"]:
        for bp in blist:
            y, shape = bottleneck(y, shape, bp)

    # fused adaptive avg pool (1,1) + fc
    N, Ho, Wo = shape
    C = y.shape[1]
    logits = pallas_avgpool_fc(y.reshape(N, Ho * Wo, C), params["fc"])
    return logits[:, :params["fc"]["n"]]


# ----------------------------------------------------------------------------
if __name__ == "__main__":
    # Small input consistent with ResNet-50's 3-channel NCHW convention.
    x = jax.random.normal(jax.random.PRNGKey(0), (2, 3, 16, 16), jnp.float32)
    params = make_params(num_classes=4)  # ['No Tumor','Meningioma','Glioma','Pituitary Tumor']

    logits = mrinet2d_forward(x, params)
    logits = jax.block_until_ready(logits)

    assert logits.shape == (2, 4), logits.shape
    assert bool(jnp.all(jnp.isfinite(logits)))
    print("KERNEL_OK")
</pallas_src>

<mosaic_0001>
module attributes {stable_mosaic.version = 11 : i64} {
  func.func @_matmul_bn_kernel(%arg0: i32, %arg1: i32, %arg2: i32, %arg3: memref<128x256xbf16, #tpu.memory_space<vmem>>, %arg4: memref<256x128xbf16, #tpu.memory_space<vmem>>, %arg5: memref<1x128xf32, #tpu.memory_space<vmem>>, %arg6: memref<1x128xf32, #tpu.memory_space<vmem>>, %arg7: memref<128x128xbf16, #tpu.memory_space<vmem>>, %arg8: memref<128x128xf32, #tpu.memory_space<vmem>>) attributes {dimension_semantics = [#tpu.dimension_semantics<parallel>, #tpu.dimension_semantics<parallel>, #tpu.dimension_semantics<arbitrary>], iteration_bounds = array<i64: 1, 1, 1>, scalar_prefetch = 0 : i64, scratch_operands = 1 : i64, tpu.core_type = #tpu.core_type<tc>, window_params = [{transform_indices = @transform_0, window_bounds = array<i64: 128, 256>}, {transform_indices = @transform_1, window_bounds = array<i64: 256, 128>}, {transform_indices = @transform_2, window_bounds = array<i64: 1, 128>}, {transform_indices = @transform_3, window_bounds = array<i64: 1, 128>}, {transform_indices = @transform_4, window_bounds = array<i64: 128, 128>}]} {
    %c0_i32 = arith.constant 0 : i32
    %0 = arith.cmpi eq, %arg2, %c0_i32 : i32
    %1 = arith.extui %0 : i1 to i32
    %c0_i32_0 = arith.constant 0 : i32
    %2 = arith.cmpi ne, %1, %c0_i32_0 : i32
    scf.if %2 {
      %cst_10 = arith.constant 0.000000e+00 : f32
      %12 = vector.broadcast %cst_10 : f32 to vector<128x128xf32>
      %c0_11 = arith.constant 0 : index
      %c0_12 = arith.constant 0 : index
      %13 = vector.load %arg8[%c0_11, %c0_12] : memref<128x128xf32, #tpu.memory_space<vmem>>, vector<128x128xf32>
      tpu.vector_store %arg8[%c0_11, %c0_12], %12 {strides = array<i32>} : memref<128x128xf32, #tpu.memory_space<vmem>>, vector<128x128xf32>,
    } else {
    }
    %c0 = arith.constant 0 : index
    %c0_1 = arith.constant 0 : index
    %3 = vector.load %arg8[%c0, %c0_1] : memref<128x128xf32, #tpu.memory_space<vmem>>, vector<128x128xf32>
    %c0_2 = arith.constant 0 : index
    %c0_3 = arith.constant 0 : index
    %4 = vector.load %arg3[%c0_2, %c0_3] : memref<128x256xbf16, #tpu.memory_space<vmem>>, vector<128x256xbf16>
    %c0_4 = arith.constant 0 : index
    %c0_5 = arith.constant 0 : index
    %5 = vector.load %arg4[%c0_4, %c0_5] : memref<256x128xbf16, #tpu.memory_space<vmem>>, vector<256x128xbf16>
    %cst = arith.constant dense<0.000000e+00> : vector<128x128xf32>
    %6 = tpu.matmul %4, %5, %cst {dimension_numbers = #tpu.dot_dimension_numbers<[1], [0], [0], [1], [0, 0, 1, 1], [], []>} : vector<128x256xbf16>, vector<256x128xbf16>, vector<128x128xf32> -> vector<128x128xf32>
    %7 = arith.addf %3, %6 : vector<128x128xf32>
    %c0_6 = arith.constant 0 : index
    %c0_7 = arith.constant 0 : index
    %8 = vector.load %arg8[%c0_6, %c0_7] : memref<128x128xf32, #tpu.memory_space<vmem>>, vector<128x128xf32>
    tpu.vector_store %arg8[%c0_6, %c0_7], %7 {strides = array<i32>} : memref<128x128xf32, #tpu.memory_space<vmem>>, vector<128x128xf32>,
    %c0_i32_8 = arith.constant 0 : i32
    %9 = arith.cmpi eq, %arg2, %c0_i32_8 : i32
    %10 = arith.extui %9 : i1 to i32
    %c0_i32_9 = arith.constant 0 : i32
    %11 = arith.cmpi ne, %10, %c0_i32_9 : i32
    scf.if %11 {
      %c0_10 = arith.constant 0 : index
      %c0_11 = arith.constant 0 : index
      %12 = vector.load %arg8[%c0_10, %c0_11] : memref<128x128xf32, #tpu.memory_space<vmem>>, vector<128x128xf32>
      %c0_12 = arith.constant 0 : index
      %c0_13 = arith.constant 0 : index
      %13 = vector.load %arg5[%c0_12, %c0_13] : memref<1x128xf32, #tpu.memory_space<vmem>>, vector<1x128xf32>
      %14 = vector.broadcast %13 : vector<1x128xf32> to vector<128x128xf32>
      %15 = arith.mulf %12, %14 : vector<128x128xf32>
      %c0_14 = arith.constant 0 : index
      %c0_15 = arith.constant 0 : index
      %16 = vector.load %arg6[%c0_14, %c0_15] : memref<1x128xf32, #tpu.memory_space<vmem>>, vector<1x128xf32>
      %17 = vector.broadcast %16 : vector<1x128xf32> to vector<128x128xf32>
      %18 = arith.addf %15, %17 : vector<128x128xf32>
      %cst_16 = arith.constant 0.000000e+00 : f32
      %19 = vector.broadcast %cst_16 : f32 to vector<128x128xf32>
      %20 = arith.maximumf %18, %19 : vector<128x128xf32>
      %21 = arith.truncf %20 : vector<128x128xf32> to vector<128x128xbf16>
      %c0_17 = arith.constant 0 : index
      %c0_18 = arith.constant 0 : index
      %22 = vector.load %arg7[%c0_17, %c0_18] : memref<128x128xbf16, #tpu.memory_space<vmem>>, vector<128x128xbf16>
      tpu.vector_store %arg7[%c0_17, %c0_18], %21 {strides = array<i32>} : memref<128x128xbf16, #tpu.memory_space<vmem>>, vector<128x128xbf16>,
    } else {
    }
    return
  }
  func.func @transform_0(%arg0: i32, %arg1: i32, %arg2: i32) -> (i32, i32) {
    %c0_i32 = arith.constant 0 : i32
    return %arg0, %arg2 : i32, i32
  }
  func.func @transform_1(%arg0: i32, %arg1: i32, %arg2: i32) -> (i32, i32) {
    %c0_i32 = arith.constant 0 : i32
    return %arg2, %arg1 : i32, i32
  }
  func.func @transform_2(%arg0: i32, %arg1: i32, %arg2: i32) -> (i32, i32) {
    %c0_i32 = arith.constant 0 : i32
    %c0_i32_0 = arith.constant 0 : i32
    return %c0_i32, %arg1 : i32, i32
  }
  func.func @transform_3(%arg0: i32, %arg1: i32, %arg2: i32) -> (i32, i32) {
    %c0_i32 = arith.constant 0 : i32
    %c0_i32_0 = arith.constant 0 : i32
    return %c0_i32, %arg1 : i32, i32
  }
  func.func @transform_4(%arg0: i32, %arg1: i32, %arg2: i32) -> (i32, i32) {
    %c0_i32 = arith.constant 0 : i32
    return %arg0, %arg1 : i32, i32
  }
}

</mosaic_0001>

<llo_original>
// kernel: tpu_custom_call.1
$region0: #{tpu_custom_call.1}
  #allocation0 [shape = 'u32[]', space=smem, size = 0x4, offset = 0x4, fixed_abs, tag = 'smem constant byte address 0x4 - core index']
  #allocation1 [shape = 'u32[144,128]{1,0:T(1,128)}', space=vmem, size = 0x12000, scoped, tag = 'internal scratch']
  #allocation2 [shape = 'f32[128,128]{1,0:T(8,128)}', space=vmem, size = 0x10000, scoped, tag = 'scratch operand']
  %s0 = inlined_call_operand.hbm [shape: bf16[128,256], index: 0, kind: input, shape index: {}]
  %s1 = inlined_call_operand.hbm [shape: bf16[256,128], index: 1, kind: input, shape index: {}]
  %s2 = inlined_call_operand.vmem [shape: f32[1,128], index: 2, kind: input, shape index: {}]
  %s3 = inlined_call_operand.vmem [shape: f32[1,128], index: 3, kind: input, shape index: {}]
  %s4 = inlined_call_operand.hbm [shape: bf16[128,128], index: 4, kind: output, shape index: {}]
  %s5 = sld [smem:[#allocation0]]
  $region42: #{tpu_custom_call.1} parent=0
    _
  %s7 = ssub.s32 1, %s5
  %s8 = scalar_select 0, %s7, %s5
  $region1: #{tpu_custom_call.1} parent=0
    #allocation3 [shape = 'u8[65536]{0}', space=vmem, size = 0x10000, scoped, tag = 'input window, operand 0, single buffered']
    #allocation4 [shape = 's32[1]{0}', space=sflag, size = 0x4, scoped, tag = 'scoped memory for tpu_custom_call.1']
    #allocation5 [shape = 's32[1]{0}', space=sflag, size = 0x4, scoped, tag = 'scoped memory for tpu_custom_call.1']
    #allocation6 [shape = 'u8[65536]{0}', space=vmem, size = 0x10000, scoped, tag = 'input window, operand 1, single buffered']
    #allocation7 [shape = 's32[1]{0}', space=sflag, size = 0x4, scoped, tag = 'scoped memory for tpu_custom_call.1']
    #allocation8 [shape = 'u8[32768]{0}', space=vmem, size = 0x8000, scoped, tag = 'output window, operand 0, single buffered']
    %9 = vsyncpa [#allocation4], 0
    %10 = vsyncpa [#allocation7], 0
    %11 = vsyncpa [#allocation5], 0
    // Predicated region
    $region2: #{tpu_custom_call.1} parent=1 // pred_check
      _
    $region3: #{tpu_custom_call.1} parent=1 // pred_check_branch
      %13 = sbr.rel (0) target = $region5
    $region4: #{tpu_custom_call.1} parent=1 // pred_region
      %s15 = ssub.s32 2048, 2048
      %16 = vsyncadd [#allocation4], %s15
      %s17 = sshll.u32 [#allocation3], 4
      %s18 = int_to_ptr.vmem [resolvable:$true] %s17
      %23 = dma.hbm_to_vmem [thread:$0]  %s0, 2048, %s18, [#allocation4], 128, 128, 8
    $region5: #{tpu_custom_call.1} parent=1 // pred_fallthru
      _
    // Predicated region
    $region6: #{tpu_custom_call.1} parent=1 // pred_check
      _
    $region7: #{tpu_custom_call.1} parent=1 // pred_check_branch
      %25 = sbr.rel (0) target = $region9
    $region8: #{tpu_custom_call.1} parent=1 // pred_region
      %s27 = ssub.s32 2048, 2048
      %28 = vsyncadd [#allocation7], %s27
      %s29 = sshll.u32 [#allocation6], 4
      %s30 = int_to_ptr.vmem [resolvable:$true] %s29
      %35 = dma.hbm_to_vmem [thread:$0]  %s1, 2048, %s30, [#allocation7], 64, 64, 4
    $region9: #{tpu_custom_call.1} parent=1 // pred_fallthru
      _
    // Predicated region
    $region10: #{tpu_custom_call.1} parent=1 // pred_check
      _
    $region11: #{tpu_custom_call.1} parent=1 // pred_check_branch
      %37 = sbr.rel (0) target = $region13
    $region12: #{tpu_custom_call.1} parent=1 // pred_region
      _
    $region13: #{tpu_custom_call.1} parent=1 // pred_fallthru
      _
    // Predicated region
    $region14: #{tpu_custom_call.1} parent=1 // pred_check
      _
    $region15: #{tpu_custom_call.1} parent=1 // pred_check_branch
      %39 = sbr.rel (0) target = $region17
    $region16: #{tpu_custom_call.1} parent=1 // pred_region
      _
    $region17: #{tpu_custom_call.1} parent=1 // pred_fallthru
      _
    // Predicated region
    $region18: #{tpu_custom_call.1} parent=1 // pred_check
      _
    $region19: #{tpu_custom_call.1} parent=1 // pred_check_branch
      %41 = sbr.rel (0) target = $region21
    $region20: #{tpu_custom_call.1} parent=1 // pred_region
      %42 = dma.done [#allocation4], 2048
    $region21: #{tpu_custom_call.1} parent=1 // pred_fallthru
      _
    // Predicated region
    $region22: #{tpu_custom_call.1} parent=1 // pred_check
      _
    $region23: #{tpu_custom_call.1} parent=1 // pred_check_branch
      %44 = sbr.rel (0) target = $region25
    $region24: #{tpu_custom_call.1} parent=1 // pred_region
      %45 = dma.done [#allocation7], 2048
    $region25: #{tpu_custom_call.1} parent=1 // pred_fallthru
      _
    %p47 = scmp.eq.s32.totalorder 0, 0
    // Predicated region
    $region26: #{tpu_custom_call.1} parent=1 // pred_check
      %p48 = pneg %p47
    $region27: #{tpu_custom_call.1} parent=1 // pred_check_branch
      %50 = sbr.rel (%p48) target = $region29
    $region28: #{tpu_custom_call.1} parent=1 // pred_region
      %51 = vst [vmem:[#allocation2] sm:$0xff] 0.0
      %52 = vst [vmem:[#allocation2 + $0x8] sm:$0xff] 0.0
      %53 = vst [vmem:[#allocation2 + $0x10] sm:$0xff] 0.0
      %54 = vst [vmem:[#allocation2 + $0x18] sm:$0xff] 0.0
      %55 = vst [vmem:[#allocation2 + $0x20] sm:$0xff] 0.0
      %56 = vst [vmem:[#allocation2 + $0x28] sm:$0xff] 0.0
      %57 = vst [vmem:[#allocation2 + $0x30] sm:$0xff] 0.0
      %58 = vst [vmem:[#allocation2 + $0x38] sm:$0xff] 0.0
      %59 = vst [vmem:[#allocation2 + $0x40] sm:$0xff] 0.0
      %60 = vst [vmem:[#allocation2 + $0x48] sm:$0xff] 0.0
      %61 = vst [vmem:[#allocation2 + $0x50] sm:$0xff] 0.0
      %62 = vst [vmem:[#allocation2 + $0x58] sm:$0xff] 0.0
      %63 = vst [vmem:[#allocation2 + $0x60] sm:$0xff] 0.0
      %64 = vst [vmem:[#allocation2 + $0x68] sm:$0xff] 0.0
      %65 = vst [vmem:[#allocation2 + $0x70] sm:$0xff] 0.0
      %66 = vst [vmem:[#allocation2 + $0x78] sm:$0xff] 0.0
    $region29: #{tpu_custom_call.1} parent=1 // pred_fallthru
      _
    %v67 = vld [vmem:[#allocation2] sm:$0xff]
    %v68 = vld [vmem:[#allocation2 + $0x8] sm:$0xff]
    %v69 = vld [vmem:[#allocation2 + $0x10] sm:$0xff]
    %v70 = vld [vmem:[#allocation2 + $0x18] sm:$0xff]
    %v71 = vld [vmem:[#allocation2 + $0x20] sm:$0xff]
    %v72 = vld [vmem:[#allocation2 + $0x28] sm:$0xff]
    %v73 = vld [vmem:[#allocation2 + $0x30] sm:$0xff]
    %v74 = vld [vmem:[#allocation2 + $0x38] sm:$0xff]
    %v75 = vld [vmem:[#allocation2 + $0x40] sm:$0xff]
    %v76 = vld [vmem:[#allocation2 + $0x48] sm:$0xff]
    %v77 = vld [vmem:[#allocation2 + $0x50] sm:$0xff]
    %v78 = vld [vmem:[#allocation2 + $0x58] sm:$0xff]
    %v79 = vld [vmem:[#allocation2 + $0x60] sm:$0xff]
    %v80 = vld [vmem:[#allocation2 + $0x68] sm:$0xff]
    %v81 = vld [vmem:[#allocation2 + $0x70] sm:$0xff]
    %v82 = vld [vmem:[#allocation2 + $0x78] sm:$0xff]
    %v83 = vld [vmem:[#allocation3] sm:$0xff]
    %v84 = vld [vmem:[#allocation3 + $0x8] sm:$0xff]
    %v85 = vld [vmem:[#allocation3 + $0x10] sm:$0xff]
    %v86 = vld [vmem:[#allocation3 + $0x18] sm:$0xff]
    %v87 = vld [vmem:[#allocation3 + $0x20] sm:$0xff]
    %v88 = vld [vmem:[#allocation3 + $0x28] sm:$0xff]
    %v89 = vld [vmem:[#allocation3 + $0x30] sm:$0xff]
    %v90 = vld [vmem:[#allocation3 + $0x38] sm:$0xff]
    %v91 = vld [vmem:[#allocation3 + $0x40] sm:$0xff]
    %v92 = vld [vmem:[#allocation3 + $0x48] sm:$0xff]
    %v93 = vld [vmem:[#allocation3 + $0x50] sm:$0xff]
    %v94 = vld [vmem:[#allocation3 + $0x58] sm:$0xff]
    %v95 = vld [vmem:[#allocation3 + $0x60] sm:$0xff]
    %v96 = vld [vmem:[#allocation3 + $0x68] sm:$0xff]
    %v97 = vld [vmem:[#allocation3 + $0x70] sm:$0xff]
    %v98 = vld [vmem:[#allocation3 + $0x78] sm:$0xff]
    %v99 = vld [vmem:[#allocation6] sm:$0xf]
    %v100 = vld [vmem:[#allocation6 + $0x4] sm:$0xf]
    %v101 = vld [vmem:[#allocation6 + $0x8] sm:$0xf]
    %v102 = vld [vmem:[#allocation6 + $0xc] sm:$0xf]
    %v103 = vld [vmem:[#allocation6 + $0x10] sm:$0xf]
    %v104 = vld [vmem:[#allocation6 + $0x14] sm:$0xf]
    %v105 = vld [vmem:[#allocation6 + $0x18] sm:$0xf]
    %v106 = vld [vmem:[#allocation6 + $0x1c] sm:$0xf]
    %v107 = vld [vmem:[#allocation6 + $0x20] sm:$0xf]
    %v108 = vld [vmem:[#allocation6 + $0x24] sm:$0xf]
    %v109 = vld [vmem:[#allocation6 + $0x28] sm:$0xf]
    %v110 = vld [vmem:[#allocation6 + $0x2c] sm:$0xf]
    %v111 = vld [vmem:[#allocation6 + $0x30] sm:$0xf]
    %v112 = vld [vmem:[#allocation6 + $0x34] sm:$0xf]
    %v113 = vld [vmem:[#allocation6 + $0x38] sm:$0xf]
    %v114 = vld [vmem:[#allocation6 + $0x3c] sm:$0xf]
    %v115 = vld [vmem:[#allocation6 + $0x40] sm:$0xf]
    %v116 = vld [vmem:[#allocation6 + $0x44] sm:$0xf]
    %v117 = vld [vmem:[#allocation6 + $0x48] sm:$0xf]
    %v118 = vld [vmem:[#allocation6 + $0x4c] sm:$0xf]
    %v119 = vld [vmem:[#allocation6 + $0x50] sm:$0xf]
    %v120 = vld [vmem:[#allocation6 + $0x54] sm:$0xf]
    %v121 = vld [vmem:[#allocation6 + $0x58] sm:$0xf]
    %v122 = vld [vmem:[#allocation6 + $0x5c] sm:$0xf]
    %v123 = vld [vmem:[#allocation6 + $0x60] sm:$0xf]
    %v124 = vld [vmem:[#allocation6 + $0x64] sm:$0xf]
    %v125 = vld [vmem:[#allocation6 + $0x68] sm:$0xf]
    %v126 = vld [vmem:[#allocation6 + $0x6c] sm:$0xf]
    %v127 = vld [vmem:[#allocation6 + $0x70] sm:$0xf]
    %v128 = vld [vmem:[#allocation6 + $0x74] sm:$0xf]
    %v129 = vld [vmem:[#allocation6 + $0x78] sm:$0xf]
    %v130 = vld [vmem:[#allocation6 + $0x7c] sm:$0xf]
    %v147 = vunpack.c.l.b16 %v83
    %v148 = vunpack.c.h.b16 %v83
    %v149 = vunpack.c.l.b16 %v84
    %v150 = vunpack.c.h.b16 %v84
    %v151 = vunpack.c.l.b16 %v85
    %v152 = vunpack.c.h.b16 %v85
    %v153 = vunpack.c.l.b16 %v86
    %v154 = vunpack.c.h.b16 %v86
    %v155 = vunpack.c.l.b16 %v87
    %v156 = vunpack.c.h.b16 %v87
    %v157 = vunpack.c.l.b16 %v88
    %v158 = vunpack.c.h.b16 %v88
    %v159 = vunpack.c.l.b16 %v89
    %v160 = vunpack.c.h.b16 %v89
    %v161 = vunpack.c.l.b16 %v90
    %v162 = vunpack.c.h.b16 %v90
    %v163 = vunpack.c.l.b16 %v91
    %v164 = vunpack.c.h.b16 %v91
    %v165 = vunpack.c.l.b16 %v92
    %v166 = vunpack.c.h.b16 %v92
    %v167 = vunpack.c.l.b16 %v93
    %v168 = vunpack.c.h.b16 %v93
    %v169 = vunpack.c.l.b16 %v94
    %v170 = vunpack.c.h.b16 %v94
    %v171 = vunpack.c.l.b16 %v95
    %v172 = vunpack.c.h.b16 %v95
    %v173 = vunpack.c.l.b16 %v96
    %v174 = vunpack.c.h.b16 %v96
    %v175 = vunpack.c.l.b16 %v97
    %v176 = vunpack.c.h.b16 %v97
    %v177 = vunpack.c.l.b16 %v98
    %v178 = vunpack.c.h.b16 %v98
    %v179 = vpack.c.b16 %v149, %v147
    %v180 = vpack.c.b16 %v150, %v148
    %v181 = vpack.c.b16 %v153, %v151
    %v182 = vpack.c.b16 %v154, %v152
    %v183 = vpack.c.b16 %v157, %v155
    %v184 = vpack.c.b16 %v158, %v156
    %v185 = vpack.c.b16 %v161, %v159
    %v186 = vpack.c.b16 %v162, %v160
    %v187 = vpack.c.b16 %v165, %v163
    %v188 = vpack.c.b16 %v166, %v164
    %v189 = vpack.c.b16 %v169, %v167
    %v190 = vpack.c.b16 %v170, %v168
    %v191 = vpack.c.b16 %v173, %v171
    %v192 = vpack.c.b16 %v174, %v172
    %v193 = vpack.c.b16 %v177, %v175
    %v194 = vpack.c.b16 %v178, %v176
    %v243 = vunpack.c.l.b16 %v99
    %v244 = vunpack.c.l.b16 %v100
    %v245 = vunpack.c.l.b16 %v101
    %v246 = vunpack.c.l.b16 %v102
    %v247 = vunpack.c.l.b16 %v103
    %v248 = vunpack.c.l.b16 %v104
    %v249 = vunpack.c.l.b16 %v105
    %v250 = vunpack.c.l.b16 %v106
    %v251 = vunpack.c.l.b16 %v107
    %v252 = vunpack.c.l.b16 %v108
    %v253 = vunpack.c.l.b16 %v109
    %v254 = vunpack.c.l.b16 %v110
    %v255 = vunpack.c.l.b16 %v111
    %v256 = vunpack.c.l.b16 %v112
    %v257 = vunpack.c.l.b16 %v113
    %v258 = vunpack.c.l.b16 %v114
    %v259 = vunpack.c.l.b16 %v115
    %v260 = vunpack.c.l.b16 %v116
    %v261 = vunpack.c.l.b16 %v117
    %v262 = vunpack.c.l.b16 %v118
    %v263 = vunpack.c.l.b16 %v119
    %v264 = vunpack.c.l.b16 %v120
    %v265 = vunpack.c.l.b16 %v121
    %v266 = vunpack.c.l.b16 %v122
    %v267 = vunpack.c.l.b16 %v123
    %v268 = vunpack.c.l.b16 %v124
    %v269 = vunpack.c.l.b16 %v125
    %v270 = vunpack.c.l.b16 %v126
    %v271 = vunpack.c.l.b16 %v127
    %v272 = vunpack.c.l.b16 %v128
    %v273 = vunpack.c.l.b16 %v129
    %v274 = vunpack.c.l.b16 %v130
    %v275 = vpack.c.b16 %v244, %v243
    %v276 = vpack.c.b16 %v246, %v245
    %v277 = vpack.c.b16 %v248, %v247
    %v278 = vpack.c.b16 %v250, %v249
    %v279 = vpack.c.b16 %v252, %v251
    %v280 = vpack.c.b16 %v254, %v253
    %v281 = vpack.c.b16 %v256, %v255
    %v282 = vpack.c.b16 %v258, %v257
    %v283 = vpack.c.b16 %v260, %v259
    %v284 = vpack.c.b16 %v262, %v261
    %v285 = vpack.c.b16 %v264, %v263
    %v286 = vpack.c.b16 %v266, %v265
    %v287 = vpack.c.b16 %v268, %v267
    %v288 = vpack.c.b16 %v270, %v269
    %v289 = vpack.c.b16 %v272, %v271
    %v290 = vpack.c.b16 %v274, %v273
    %307 = vmatprep.subr.bf16.mxu0 0
    %308 = vmatpush1.bf16.msra.mxu0 %v282
    %309 = vmatprep.subr.bf16.mxu0 0
    %310 = vmatpush1.bf16.msra.mxu0 %v281
    %311 = vmatprep.subr.bf16.mxu0 0
    %312 = vmatpush1.bf16.msra.mxu0 %v280
    %313 = vmatprep.subr.bf16.mxu0 0
    %314 = vmatpush1.bf16.msra.mxu0 %v279
    %315 = vmatprep.subr.bf16.mxu0 0
    %316 = vmatpush1.bf16.msra.mxu0 %v278
    %317 = vmatprep.subr.bf16.mxu0 0
    %318 = vmatpush1.bf16.msra.mxu0 %v277
    %319 = vmatprep.subr.bf16.mxu0 0
    %320 = vmatpush1.bf16.msra.mxu0 %v276
    %321 = vmatprep.subr.bf16.mxu0 0
    %322 = vmatpush1.bf16.msra.mxu0 %v275
    %323 = vmatprep.subr.bf16.mxu0 0
    %324 = vmatpush2.bf16.msra.mxu0 %v290
    %325 = vmatprep.subr.bf16.mxu0 0
    %326 = vmatpush2.bf16.msra.mxu0 %v289
    %327 = vmatprep.subr.bf16.mxu0 0
    %328 = vmatpush2.bf16.msra.mxu0 %v288
    %329 = vmatprep.subr.bf16.mxu0 0
    %330 = vmatpush2.bf16.msra.mxu0 %v287
    %331 = vmatprep.subr.bf16.mxu0 0
    %332 = vmatpush2.bf16.msra.mxu0 %v286
    %333 = vmatprep.subr.bf16.mxu0 0
    %334 = vmatpush2.bf16.msra.mxu0 %v285
    %335 = vmatprep.subr.bf16.mxu0 0
    %336 = vmatpush2.bf16.msra.mxu0 %v284
    %337 = vmatprep.subr.bf16.mxu0 0
    %338 = vmatpush2.bf16.msra.mxu0 %v283
    %339 = vmatprep.mubr.bf16.mxu0 %v180
    %340 = vmatmul.mubr.bf16.gmra.mxu0 %v179
    %v341 = vpop.f32.mrf.mxu0
    %v342 = vadd.f32 0.0, %v341
    %v343 = vpop.f32.mrf.mxu0
    %v344 = vpop.f32.mrf.mxu0
    %v345 = vadd.f32 0.0, %v344
    %v346 = vpop.f32.mrf.mxu0
    %347 = vmatprep.mubr.bf16.mxu0 %v182
    %348 = vmatmul.mubr.bf16.gmra.mxu0 %v181
    %v349 = vpop.f32.mrf.mxu0
    %v350 = vadd.f32 0.0, %v349
    %v351 = vpop.f32.mrf.mxu0
    %v352 = vpop.f32.mrf.mxu0
    %v353 = vadd.f32 0.0, %v352
    %v354 = vpop.f32.mrf.mxu0
    %355 = vmatprep.mubr.bf16.mxu0 %v184
    %356 = vmatmul.mubr.bf16.gmra.mxu0 %v183
    %v357 = vpop.f32.mrf.mxu0
    %v358 = vadd.f32 0.0, %v357
    %v359 = vpop.f32.mrf.mxu0
    %v360 = vpop.f32.mrf.mxu0
    %v361 = vadd.f32 0.0, %v360
    %v362 = vpop.f32.mrf.mxu0
    %363 = vmatprep.mubr.bf16.mxu0 %v186
    %364 = vmatmul.mubr.bf16.gmra.mxu0 %v185
    %v365 = vpop.f32.mrf.mxu0
    %v366 = vadd.f32 0.0, %v365
    %v367 = vpop.f32.mrf.mxu0
    %v368 = vpop.f32.mrf.mxu0
    %v369 = vadd.f32 0.0, %v368
    %v370 = vpop.f32.mrf.mxu0
    %371 = vmatprep.mubr.bf16.mxu0 %v188
    %372 = vmatmul.mubr.bf16.gmra.mxu0 %v187
    %v373 = vpop.f32.mrf.mxu0
    %v374 = vadd.f32 0.0, %v373
    %v375 = vpop.f32.mrf.mxu0
    %v376 = vpop.f32.mrf.mxu0
    %v377 = vadd.f32 0.0, %v376
    %v378 = vpop.f32.mrf.mxu0
    %379 = vmatprep.mubr.bf16.mxu0 %v190
    %380 = vmatmul.mubr.bf16.gmra.mxu0 %v189
    %v381 = vpop.f32.mrf.mxu0
    %v382 = vadd.f32 0.0, %v381
    %v383 = vpop.f32.mrf.mxu0
    %v384 = vpop.f32.mrf.mxu0
    %v385 = vadd.f32 0.0, %v384
    %v386 = vpop.f32.mrf.mxu0
    %387 = vmatprep.mubr.bf16.mxu0 %v192
    %388 = vmatmul.mubr.bf16.gmra.mxu0 %v191
    %v389 = vpop.f32.mrf.mxu0
    %v390 = vadd.f32 0.0, %v389
    %v391 = vpop.f32.mrf.mxu0
    %v392 = vpop.f32.mrf.mxu0
    %v393 = vadd.f32 0.0, %v392
    %v394 = vpop.f32.mrf.mxu0
    %395 = vmatprep.mubr.bf16.mxu0 %v194
    %396 = vmatmul.mubr.bf16.gmra.mxu0 %v193
    %v397 = vpop.f32.mrf.mxu0
    %v398 = vadd.f32 0.0, %v397
    %v399 = vpop.f32.mrf.mxu0
    %v400 = vpop.f32.mrf.mxu0
    %v401 = vadd.f32 0.0, %v400
    %v402 = vpop.f32.mrf.mxu0
    %403 = vdwg.mxu0
    %v404 = vadd.f32 %v67, %v342
    %v405 = vadd.f32 %v68, %v345
    %v406 = vadd.f32 %v69, %v350
    %v407 = vadd.f32 %v70, %v353
    %v408 = vadd.f32 %v71, %v358
    %v409 = vadd.f32 %v72, %v361
    %v410 = vadd.f32 %v73, %v366
    %v411 = vadd.f32 %v74, %v369
    %v412 = vadd.f32 %v75, %v374
    %v413 = vadd.f32 %v76, %v377
    %v414 = vadd.f32 %v77, %v382
    %v415 = vadd.f32 %v78, %v385
    %v416 = vadd.f32 %v79, %v390
    %v417 = vadd.f32 %v80, %v393
    %v418 = vadd.f32 %v81, %v398
    %v419 = vadd.f32 %v82, %v401
    %420 = vst [vmem:[#allocation2] sm:$0xff] %v404
    %421 = vst [vmem:[#allocation2 + $0x8] sm:$0xff] %v405
    %422 = vst [vmem:[#allocation2 + $0x10] sm:$0xff] %v406
    %423 = vst [vmem:[#allocation2 + $0x18] sm:$0xff] %v407
    %424 = vst [vmem:[#allocation2 + $0x20] sm:$0xff] %v408
    %425 = vst [vmem:[#allocation2 + $0x28] sm:$0xff] %v409
    %426 = vst [vmem:[#allocation2 + $0x30] sm:$0xff] %v410
    %427 = vst [vmem:[#allocation2 + $0x38] sm:$0xff] %v411
    %428 = vst [vmem:[#allocation2 + $0x40] sm:$0xff] %v412
    %429 = vst [vmem:[#allocation2 + $0x48] sm:$0xff] %v413
    %430 = vst [vmem:[#allocation2 + $0x50] sm:$0xff] %v414
    %431 = vst [vmem:[#allocation2 + $0x58] sm:$0xff] %v415
    %432 = vst [vmem:[#allocation2 + $0x60] sm:$0xff] %v416
    %433 = vst [vmem:[#allocation2 + $0x68] sm:$0xff] %v417
    %434 = vst [vmem:[#allocation2 + $0x70] sm:$0xff] %v418
    %435 = vst [vmem:[#allocation2 + $0x78] sm:$0xff] %v419
    // Predicated region
    $region30: #{tpu_custom_call.1} parent=1 // pred_check
      %p436 = pneg %p47
    $region31: #{tpu_custom_call.1} parent=1 // pred_check_branch
      %438 = sbr.rel (%p436) target = $region33
    $region32: #{tpu_custom_call.1} parent=1 // pred_region
      %v439 = vld [vmem:[#allocation2] sm:$0xff]
      %v440 = vld [vmem:[#allocation2 + $0x8] sm:$0xff]
      %v441 = vld [vmem:[#allocation2 + $0x10] sm:$0xff]
      %v442 = vld [vmem:[#allocation2 + $0x18] sm:$0xff]
      %v443 = vld [vmem:[#allocation2 + $0x20] sm:$0xff]
      %v444 = vld [vmem:[#allocation2 + $0x28] sm:$0xff]
      %v445 = vld [vmem:[#allocation2 + $0x30] sm:$0xff]
      %v446 = vld [vmem:[#allocation2 + $0x38] sm:$0xff]
      %v447 = vld [vmem:[#allocation2 + $0x40] sm:$0xff]
      %v448 = vld [vmem:[#allocation2 + $0x48] sm:$0xff]
      %v449 = vld [vmem:[#allocation2 + $0x50] sm:$0xff]
      %v450 = vld [vmem:[#allocation2 + $0x58] sm:$0xff]
      %v451 = vld [vmem:[#allocation2 + $0x60] sm:$0xff]
      %v452 = vld [vmem:[#allocation2 + $0x68] sm:$0xff]
      %v453 = vld [vmem:[#allocation2 + $0x70] sm:$0xff]
      %v454 = vld [vmem:[#allocation2 + $0x78] sm:$0xff]
      %v455 = vld [vmem:[%s2] sm:$0x1]
      %v457 = vlaneseq
      %v458 = vshrl.u32 %v457, 7
      %v459 = vsub.s32 0, %v458
      %v460 = vrot.slane %v455, %v459
      %v462 = vmul.f32 %v439, %v460
      %v463 = vmul.f32 %v440, %v460
      %v464 = vmul.f32 %v441, %v460
      %v465 = vmul.f32 %v442, %v460
      %v466 = vmul.f32 %v443, %v460
      %v467 = vmul.f32 %v444, %v460
      %v468 = vmul.f32 %v445, %v460
      %v469 = vmul.f32 %v446, %v460
      %v470 = vmul.f32 %v447, %v460
      %v471 = vmul.f32 %v448, %v460
      %v472 = vmul.f32 %v449, %v460
      %v473 = vmul.f32 %v450, %v460
      %v474 = vmul.f32 %v451, %v460
      %v475 = vmul.f32 %v452, %v460
      %v476 = vmul.f32 %v453, %v460
      %v477 = vmul.f32 %v454, %v460
      %v478 = vld [vmem:[%s3] sm:$0x1]
      %v480 = vlaneseq
      %v481 = vshrl.u32 %v480, 7
      %v482 = vsub.s32 0, %v481
      %v483 = vrot.slane %v478, %v482
      %v485 = vadd.f32 %v462, %v483
      %v486 = vadd.f32 %v463, %v483
      %v487 = vadd.f32 %v464, %v483
      %v488 = vadd.f32 %v465, %v483
      %v489 = vadd.f32 %v466, %v483
      %v490 = vadd.f32 %v467, %v483
      %v491 = vadd.f32 %v468, %v483
      %v492 = vadd.f32 %v469, %v483
      %v493 = vadd.f32 %v470, %v483
      %v494 = vadd.f32 %v471, %v483
      %v495 = vadd.f32 %v472, %v483
      %v496 = vadd.f32 %v473, %v483
      %v497 = vadd.f32 %v474, %v483
      %v498 = vadd.f32 %v475, %v483
      %v499 = vadd.f32 %v476, %v483
      %v500 = vadd.f32 %v477, %v483
      %v501 = vmax.f32 %v485, 0.0
      %v502 = vmax.f32 %v486, 0.0
      %v503 = vmax.f32 %v487, 0.0
      %v504 = vmax.f32 %v488, 0.0
      %v505 = vmax.f32 %v489, 0.0
      %v506 = vmax.f32 %v490, 0.0
      %v507 = vmax.f32 %v491, 0.0
      %v508 = vmax.f32 %v492, 0.0
      %v509 = vmax.f32 %v493, 0.0
      %v510 = vmax.f32 %v494, 0.0
      %v511 = vmax.f32 %v495, 0.0
      %v512 = vmax.f32 %v496, 0.0
      %v513 = vmax.f32 %v497, 0.0
      %v514 = vmax.f32 %v498, 0.0
      %v515 = vmax.f32 %v499, 0.0
      %v516 = vmax.f32 %v500, 0.0
      %v517 = vpack.c.bf16 %v502, %v501
      %v518 = vpack.c.bf16 %v504, %v503
      %v519 = vpack.c.bf16 %v506, %v505
      %v520 = vpack.c.bf16 %v508, %v507
      %v521 = vpack.c.bf16 %v510, %v509
      %v522 = vpack.c.bf16 %v512, %v511
      %v523 = vpack.c.bf16 %v514, %v513
      %v524 = vpack.c.bf16 %v516, %v515
      %v533 = vunpack.c.l.b16 %v517
      %v534 = vunpack.c.h.b16 %v517
      %v535 = vunpack.c.l.b16 %v518
      %v536 = vunpack.c.h.b16 %v518
      %v537 = vunpack.c.l.b16 %v519
      %v538 = vunpack.c.h.b16 %v519
      %v539 = vunpack.c.l.b16 %v520
      %v540 = vunpack.c.h.b16 %v520
      %v541 = vunpack.c.l.b16 %v521
      %v542 = vunpack.c.h.b16 %v521
      %v543 = vunpack.c.l.b16 %v522
      %v544 = vunpack.c.h.b16 %v522
      %v545 = vunpack.c.l.b16 %v523
      %v546 = vunpack.c.h.b16 %v523
      %v547 = vunpack.c.l.b16 %v524
      %v548 = vunpack.c.h.b16 %v524
      %v549 = vpack.c.b16 %v533, %v533
      %v550 = vpack.c.b16 %v534, %v534
      %v551 = vpack.c.b16 %v535, %v535
      %v552 = vpack.c.b16 %v536, %v536
      %v553 = vpack.c.b16 %v537, %v537
      %v554 = vpack.c.b16 %v538, %v538
      %v555 = vpack.c.b16 %v539, %v539
      %v556 = vpack.c.b16 %v540, %v540
      %v557 = vpack.c.b16 %v541, %v541
      %v558 = vpack.c.b16 %v542, %v542
      %v559 = vpack.c.b16 %v543, %v543
      %v560 = vpack.c.b16 %v544, %v544
      %v561 = vpack.c.b16 %v545, %v545
      %v562 = vpack.c.b16 %v546, %v546
      %v563 = vpack.c.b16 %v547, %v547
      %v564 = vpack.c.b16 %v548, %v548
      %581 = vst [vmem:[#allocation8] sm:$0xf] %v549
      %582 = vst [vmem:[#allocation8 + $0x4] sm:$0xf] %v550
      %583 = vst [vmem:[#allocation8 + $0x8] sm:$0xf] %v551
      %584 = vst [vmem:[#allocation8 + $0xc] sm:$0xf] %v552
      %585 = vst [vmem:[#allocation8 + $0x10] sm:$0xf] %v553
      %586 = vst [vmem:[#allocation8 + $0x14] sm:$0xf] %v554
      %587 = vst [vmem:[#allocation8 + $0x18] sm:$0xf] %v555
      %588 = vst [vmem:[#allocation8 + $0x1c] sm:$0xf] %v556
      %589 = vst [vmem:[#allocation8 + $0x20] sm:$0xf] %v557
      %590 = vst [vmem:[#allocation8 + $0x24] sm:$0xf] %v558
      %591 = vst [vmem:[#allocation8 + $0x28] sm:$0xf] %v559
      %592 = vst [vmem:[#allocation8 + $0x2c] sm:$0xf] %v560
      %593 = vst [vmem:[#allocation8 + $0x30] sm:$0xf] %v561
      %594 = vst [vmem:[#allocation8 + $0x34] sm:$0xf] %v562
      %595 = vst [vmem:[#allocation8 + $0x38] sm:$0xf] %v563
      %596 = vst [vmem:[#allocation8 + $0x3c] sm:$0xf] %v564
    $region33: #{tpu_custom_call.1} parent=1 // pred_fallthru
      _
    // Predicated region
    $region34: #{tpu_custom_call.1} parent=1 // pred_check
      _
    $region35: #{tpu_custom_call.1} parent=1 // pred_check_branch
      %598 = sbr.rel (0) target = $region37
    $region36: #{tpu_custom_call.1} parent=1 // pred_region
      %s600 = ssub.s32 1024, 1024
      %601 = vsyncadd [#allocation5], %s600
      %s602 = sshll.u32 [#allocation8], 4
      %s603 = int_to_ptr.vmem [resolvable:$true] %s602
      %608 = dma.vmem_to_hbm [thread:$0]  %s603, 1024, %s4, [#allocation5], 64, 64, 4
    $region37: #{tpu_custom_call.1} parent=1 // pred_fallthru
      _
    // Predicated region
    $region38: #{tpu_custom_call.1} parent=1 // pred_check
      _
    $region39: #{tpu_custom_call.1} parent=1 // pred_check_branch
      %610 = sbr.rel (0) target = $region41
    $region40: #{tpu_custom_call.1} parent=1 // pred_region
      %611 = dma.done [#allocation5], 1024
    $region41: #{tpu_custom_call.1} parent=1 // pred_fallthru
      _
    %612 = vsyncpa [#allocation4], 1
    %613 = vsyncpa [#allocation7], 1
    %614 = vsyncpa [#allocation5], 1

</llo_original>
